<compile_context>
chip_gen: v7x
topology: tpu7x:2x2x1
jax: 0.10.0
libtpu: 0.0.40
codegen_flags: <defaults>
</compile_context>

<pallas_src>
import functools

import jax
import jax.numpy as jnp
import numpy as np
from jax.experimental import pallas as pl
from jax.experimental.pallas import tpu as pltpu


def _tap_masks(H: int, W: int, TB: int) -> np.ndarray:
    """masks[t, p] == 1 iff tap t=kh*3+kw at flat position p reads a real pixel
    (zero-padding and cross-image wrap positions of the rolled (C, TB*H*W) slab
    are zeroed)."""
    p = np.arange(H * W)
    r, c = p // W, p % W
    m = np.zeros((9, H * W), np.float32)
    for kh in range(3):
        for kw in range(3):
            dh, dw = kh - 1, kw - 1
            ok = (r + dh >= 0) & (r + dh < H) & (c + dw >= 0) & (c + dw < W)
            m[kh * 3 + kw, ok] = 1.0
    return np.tile(m, (1, TB))                                # (9, TB*H*W)


def _cb_kernel(x_ref, w1_ref, b1_ref, w2_ref, b2_ref, w3_ref, b3_ref, m_ref,
               o_ref, *, C, W, L, alpha):
    x = x_ref[...].astype(jnp.float32)                        # (C, L)
    mrows = m_ref[...]                                        # (9, L) 0/1 f32
    # Hoisted: one broadcast per tap per grid step, reused by all three convs.
    masks = [jnp.broadcast_to(mrows[t:t + 1, :], (C, L)) for t in range(9)]

    def sh(a, k):                                             # out[p] = a[p - k]
        return pltpu.roll(a, shift=k % L, axis=1)

    def conv3x3(v, w_ref_, b_ref_):
        # v: (C, L) f32 -> (C, L) f32 via a single (C,9C)@(9C,L) MXU matmul.
        up = sh(v, W)                                         # source offset -W
        dn = sh(v, L - W)                                     # source offset +W
        taps = (
            sh(up, 1) * masks[0],                             # (-1,-1)
            up * masks[1],                                    # (-1, 0)
            sh(up, L - 1) * masks[2],                         # (-1,+1)
            sh(v, 1) * masks[3],                              # ( 0,-1)
            v,                                                # ( 0, 0) center
            sh(v, L - 1) * masks[5],                          # ( 0,+1)
            sh(dn, 1) * masks[6],                             # (+1,-1)
            dn * masks[7],                                    # (+1, 0)
            sh(dn, L - 1) * masks[8],                         # (+1,+1)
        )
        stacked = jnp.concatenate(taps, axis=0).astype(jnp.bfloat16)  # (9C, L)
        return jnp.dot(w_ref_[...], stacked,
                       preferred_element_type=jnp.float32) + b_ref_[...]

    c1 = conv3x3(x, w1_ref, b1_ref)
    c2 = conv3x3(c1, w2_ref, b2_ref)
    c2 = jnp.where(c2 > 0, c2, alpha * c2)                    # LeakyReLU(0.2)
    c3 = conv3x3(c2, w3_ref, b3_ref)
    o_ref[...] = (x + c3).astype(o_ref.dtype)                 # residual add


def _pick_tb(N, C, HW, itemsize, budget, tb_cap):
    """Largest batch-block TB (divisor of N) whose full VMEM footprint fits."""
    def est(tb):
        L = tb * HW
        io = 2 * 2 * C * L * itemsize                         # dbl-buffered in + out
        params = 2 * (3 * (C * 9 * C * 2 + C * 4) + 9 * L * 4)
        work = 80 * C * L                                     # f32 taps/stack + c1..c3
        return io + params + work

    aligned = [d for d in range(1, N + 1)
               if N % d == 0 and ((d * HW) % 128 == 0 or d == N)]
    fitting = [d for d in aligned if d <= tb_cap and est(d) <= budget]
    if not fitting:
        # TODO(synk): H-row-block (halo) tiling path for feature maps too large
        # for a single image block in scoped VMEM (bites first on v7x, 64 MiB).
        return min(aligned)
    pref = [d for d in fitting if (d * HW) % 256 == 0]        # full 256-wide MXU
    return max(pref) if pref else max(fitting)


def cb_forward(x, w1, b1, w2, b2, w3, b3, *, vmem_limit_bytes=32 << 20):
    """Equivalent of CB.forward(x): NCHW input, PyTorch Conv2d (OIHW) weights."""
    N, C, H, W = x.shape
    HW = H * W
    for w in (w1, w2, w3):
        assert w.shape == (C, C, 3, 3)

    tb_cap = max(1, N // 2)                                   # keep >=2 grid steps
    TB = _pick_tb(N, C, HW, x.dtype.itemsize,
                  budget=vmem_limit_bytes // 2, tb_cap=tb_cap)
    L = TB * HW

    # (O, I, 3, 3) -> (O, 9I) with tap-major columns matching the stacked operand.
    def fuse_w(w):
        return jnp.transpose(w, (0, 2, 3, 1)).reshape(C, 9 * C).astype(jnp.bfloat16)

    wf1, wf2, wf3 = fuse_w(w1), fuse_w(w2), fuse_w(w3)
    bf1 = b1.reshape(C, 1).astype(jnp.float32)
    bf2 = b2.reshape(C, 1).astype(jnp.float32)
    bf3 = b3.reshape(C, 1).astype(jnp.float32)
    masks = jnp.asarray(_tap_masks(H, W, TB))                 # (9, L)

    # Channel-major, lane-dense layout: one (C, N*HW) slab, blocked along lanes.
    x_cm = jnp.transpose(x, (1, 0, 2, 3)).reshape(C, N * HW)

    kernel = functools.partial(_cb_kernel, C=C, W=W, L=L, alpha=0.2)

    def full(shape):
        n = len(shape)
        return pl.BlockSpec(shape, lambda i, _n=n: (0,) * _n)

    flops = 2 * 3 * N * HW * C * 9 * C
    bytes_accessed = (2 * x.size * x.dtype.itemsize
                      + 3 * (wf1.size * 2 + C * 4) + masks.size * 4)

    out_cm = pl.pallas_call(
        kernel,
        out_shape=jax.ShapeDtypeStruct((C, N * HW), x.dtype),
        grid_spec=pltpu.PrefetchScalarGridSpec(
            num_scalar_prefetch=0,
            grid=(N // TB,),
            in_specs=[
                pl.BlockSpec((C, L), lambda i: (0, i)),       # x lane-block
                full((C, 9 * C)), full((C, 1)),               # conv1 params
                full((C, 9 * C)), full((C, 1)),               # conv2 params
                full((C, 9 * C)), full((C, 1)),               # conv3 params
                full((9, L)),                                 # tap masks
            ],
            out_specs=pl.BlockSpec((C, L), lambda i: (0, i)),
        ),
        compiler_params=pltpu.CompilerParams(
            dimension_semantics=("parallel",),
            vmem_limit_bytes=vmem_limit_bytes),
        cost_estimate=pl.CostEstimate(
            flops=flops, transcendentals=0, bytes_accessed=bytes_accessed),
    )(x_cm, wf1, bf1, wf2, bf2, wf3, bf3, masks)

    return jnp.transpose(out_cm.reshape(C, N, H, W), (1, 0, 2, 3))


if __name__ == "__main__":
    key = jax.random.PRNGKey(0)
    ks = jax.random.split(key, 7)
    N, C, H, W = 2, 4, 16, 16
    x = jax.random.normal(ks[0], (N, C, H, W), dtype=jnp.float32)
    w1 = 0.1 * jax.random.normal(ks[1], (C, C, 3, 3), dtype=jnp.float32)
    b1 = 0.1 * jax.random.normal(ks[2], (C,), dtype=jnp.float32)
    w2 = 0.1 * jax.random.normal(ks[3], (C, C, 3, 3), dtype=jnp.float32)
    b2 = 0.1 * jax.random.normal(ks[4], (C,), dtype=jnp.float32)
    w3 = 0.1 * jax.random.normal(ks[5], (C, C, 3, 3), dtype=jnp.float32)
    b3 = 0.1 * jax.random.normal(ks[6], (C,), dtype=jnp.float32)

    out = cb_forward(x, w1, b1, w2, b2, w3, b3)
    out = jax.block_until_ready(out)
    assert out.shape == (N, C, H, W), out.shape

    # Pure-JAX f32 reference (sanity check of the fused kernel).
    def conv_ref(v, w, b):
        y = jax.lax.conv_general_dilated(
            v, w, window_strides=(1, 1), padding=((1, 1), (1, 1)),
            dimension_numbers=("NCHW", "OIHW", "NCHW"),
            precision=jax.lax.Precision.HIGHEST)
        return y + b[None, :, None, None]

    r1 = conv_ref(x, w1, b1)
    r2 = conv_ref(r1, w2, b2)
    r2 = jnp.where(r2 > 0, r2, 0.2 * r2)
    r3 = conv_ref(r2, w3, b3)
    ref = x + r3

    # Tolerance accounts for bf16 MXU operands (f32 accumulation) in the kernel.
    err = float(jnp.max(jnp.abs(out - ref)))
    assert err < 3e-2, f"max abs err {err}"
    print("KERNEL_OK")
</pallas_src>

<mosaic_0001>
module attributes {stable_mosaic.version = 11 : i64} {
  func.func @_cb_kernel(%arg0: i32, %arg1: memref<4x256xf32, #tpu.memory_space<vmem>>, %arg2: memref<4x36xbf16, #tpu.memory_space<vmem>>, %arg3: memref<4x1xf32, #tpu.memory_space<vmem>>, %arg4: memref<4x36xbf16, #tpu.memory_space<vmem>>, %arg5: memref<4x1xf32, #tpu.memory_space<vmem>>, %arg6: memref<4x36xbf16, #tpu.memory_space<vmem>>, %arg7: memref<4x1xf32, #tpu.memory_space<vmem>>, %arg8: memref<9x256xf32, #tpu.memory_space<vmem>>, %arg9: memref<4x256xf32, #tpu.memory_space<vmem>>) attributes {dimension_semantics = [#tpu.dimension_semantics<parallel>], iteration_bounds = array<i64: 2>, scalar_prefetch = 0 : i64, scratch_operands = 0 : i64, tpu.core_type = #tpu.core_type<tc>, window_params = [{transform_indices = @transform_0, window_bounds = array<i64: 4, 256>}, {pipeline_mode = #tpu.pipeline_mode<synchronous>, transform_indices = @transform_1, window_bounds = array<i64: 4, 36>}, {pipeline_mode = #tpu.pipeline_mode<synchronous>, transform_indices = @transform_2, window_bounds = array<i64: 4, 1>}, {pipeline_mode = #tpu.pipeline_mode<synchronous>, transform_indices = @transform_3, window_bounds = array<i64: 4, 36>}, {pipeline_mode = #tpu.pipeline_mode<synchronous>, transform_indices = @transform_4, window_bounds = array<i64: 4, 1>}, {pipeline_mode = #tpu.pipeline_mode<synchronous>, transform_indices = @transform_5, window_bounds = array<i64: 4, 36>}, {pipeline_mode = #tpu.pipeline_mode<synchronous>, transform_indices = @transform_6, window_bounds = array<i64: 4, 1>}, {pipeline_mode = #tpu.pipeline_mode<synchronous>, transform_indices = @transform_7, window_bounds = array<i64: 9, 256>}, {transform_indices = @transform_8, window_bounds = array<i64: 4, 256>}]} {
    %c0 = arith.constant 0 : index
    %c0_0 = arith.constant 0 : index
    %0 = vector.load %arg1[%c0, %c0_0] : memref<4x256xf32, #tpu.memory_space<vmem>>, vector<4x256xf32>
    %c0_1 = arith.constant 0 : index
    %c0_2 = arith.constant 0 : index
    %1 = vector.load %arg8[%c0_1, %c0_2] : memref<9x256xf32, #tpu.memory_space<vmem>>, vector<9x256xf32>
    %2 = vector.extract_strided_slice %1 {offsets = [0, 0], sizes = [1, 256], strides = [1, 1]} : vector<9x256xf32> to vector<1x256xf32>
    %3 = vector.shape_cast %2 : vector<1x256xf32> to vector<1x256xf32>
    %4 = vector.broadcast %3 : vector<1x256xf32> to vector<4x256xf32>
    %5 = vector.extract_strided_slice %1 {offsets = [1, 0], sizes = [1, 256], strides = [1, 1]} : vector<9x256xf32> to vector<1x256xf32>
    %6 = vector.shape_cast %5 : vector<1x256xf32> to vector<1x256xf32>
    %7 = vector.broadcast %6 : vector<1x256xf32> to vector<4x256xf32>
    %8 = vector.extract_strided_slice %1 {offsets = [2, 0], sizes = [1, 256], strides = [1, 1]} : vector<9x256xf32> to vector<1x256xf32>
    %9 = vector.shape_cast %8 : vector<1x256xf32> to vector<1x256xf32>
    %10 = vector.broadcast %9 : vector<1x256xf32> to vector<4x256xf32>
    %11 = vector.extract_strided_slice %1 {offsets = [3, 0], sizes = [1, 256], strides = [1, 1]} : vector<9x256xf32> to vector<1x256xf32>
    %12 = vector.shape_cast %11 : vector<1x256xf32> to vector<1x256xf32>
    %13 = vector.broadcast %12 : vector<1x256xf32> to vector<4x256xf32>
    %14 = vector.extract_strided_slice %1 {offsets = [5, 0], sizes = [1, 256], strides = [1, 1]} : vector<9x256xf32> to vector<1x256xf32>
    %15 = vector.shape_cast %14 : vector<1x256xf32> to vector<1x256xf32>
    %16 = vector.broadcast %15 : vector<1x256xf32> to vector<4x256xf32>
    %17 = vector.extract_strided_slice %1 {offsets = [6, 0], sizes = [1, 256], strides = [1, 1]} : vector<9x256xf32> to vector<1x256xf32>
    %18 = vector.shape_cast %17 : vector<1x256xf32> to vector<1x256xf32>
    %19 = vector.broadcast %18 : vector<1x256xf32> to vector<4x256xf32>
    %20 = vector.extract_strided_slice %1 {offsets = [7, 0], sizes = [1, 256], strides = [1, 1]} : vector<9x256xf32> to vector<1x256xf32>
    %21 = vector.shape_cast %20 : vector<1x256xf32> to vector<1x256xf32>
    %22 = vector.broadcast %21 : vector<1x256xf32> to vector<4x256xf32>
    %23 = vector.extract_strided_slice %1 {offsets = [8, 0], sizes = [1, 256], strides = [1, 1]} : vector<9x256xf32> to vector<1x256xf32>
    %24 = vector.shape_cast %23 : vector<1x256xf32> to vector<1x256xf32>
    %25 = vector.broadcast %24 : vector<1x256xf32> to vector<4x256xf32>
    %c16_i32 = arith.constant 16 : i32
    %26 = tpu.dynamic_rotate %0 by %c16_i32 dim 1 : vector<4x256xf32>, i32 -> vector<4x256xf32>
    %c240_i32 = arith.constant 240 : i32
    %27 = tpu.dynamic_rotate %0 by %c240_i32 dim 1 : vector<4x256xf32>, i32 -> vector<4x256xf32>
    %c1_i32 = arith.constant 1 : i32
    %28 = tpu.dynamic_rotate %26 by %c1_i32 dim 1 : vector<4x256xf32>, i32 -> vector<4x256xf32>
    %29 = arith.mulf %28, %4 : vector<4x256xf32>
    %30 = arith.mulf %26, %7 : vector<4x256xf32>
    %c255_i32 = arith.constant 255 : i32
    %31 = tpu.dynamic_rotate %26 by %c255_i32 dim 1 : vector<4x256xf32>, i32 -> vector<4x256xf32>
    %32 = arith.mulf %31, %10 : vector<4x256xf32>
    %c1_i32_3 = arith.constant 1 : i32
    %33 = tpu.dynamic_rotate %0 by %c1_i32_3 dim 1 : vector<4x256xf32>, i32 -> vector<4x256xf32>
    %34 = arith.mulf %33, %13 : vector<4x256xf32>
    %c255_i32_4 = arith.constant 255 : i32
    %35 = tpu.dynamic_rotate %0 by %c255_i32_4 dim 1 : vector<4x256xf32>, i32 -> vector<4x256xf32>
    %36 = arith.mulf %35, %16 : vector<4x256xf32>
    %c1_i32_5 = arith.constant 1 : i32
    %37 = tpu.dynamic_rotate %27 by %c1_i32_5 dim 1 : vector<4x256xf32>, i32 -> vector<4x256xf32>
    %38 = arith.mulf %37, %19 : vector<4x256xf32>
    %39 = arith.mulf %27, %22 : vector<4x256xf32>
    %c255_i32_6 = arith.constant 255 : i32
    %40 = tpu.dynamic_rotate %27 by %c255_i32_6 dim 1 : vector<4x256xf32>, i32 -> vector<4x256xf32>
    %41 = arith.mulf %40, %25 : vector<4x256xf32>
    %42 = tpu.concatenate %29, %30, %32, %34, %0, %36, %38, %39, %41 in 0 : vector<4x256xf32>, vector<4x256xf32>, vector<4x256xf32>, vector<4x256xf32>, vector<4x256xf32>, vector<4x256xf32>, vector<4x256xf32>, vector<4x256xf32>, vector<4x256xf32> -> vector<36x256xf32>
    %43 = arith.truncf %42 : vector<36x256xf32> to vector<36x256xbf16>
    %c0_7 = arith.constant 0 : index
    %c0_8 = arith.constant 0 : index
    %44 = vector.load %arg2[%c0_7, %c0_8] : memref<4x36xbf16, #tpu.memory_space<vmem>>, vector<4x36xbf16>
    %cst = arith.constant dense<0.000000e+00> : vector<4x256xf32>
    %45 = tpu.matmul %44, %43, %cst {dimension_numbers = #tpu.dot_dimension_numbers<[1], [0], [0], [1], [0, 0, 1, 1], [], []>} : vector<4x36xbf16>, vector<36x256xbf16>, vector<4x256xf32> -> vector<4x256xf32>
    %c0_9 = arith.constant 0 : index
    %c0_10 = arith.constant 0 : index
    %46 = vector.load %arg3[%c0_9, %c0_10] : memref<4x1xf32, #tpu.memory_space<vmem>>, vector<4x1xf32>
    %47 = vector.broadcast %46 : vector<4x1xf32> to vector<4x256xf32>
    %48 = arith.addf %45, %47 : vector<4x256xf32>
    %c16_i32_11 = arith.constant 16 : i32
    %49 = tpu.dynamic_rotate %48 by %c16_i32_11 dim 1 : vector<4x256xf32>, i32 -> vector<4x256xf32>
    %c240_i32_12 = arith.constant 240 : i32
    %50 = tpu.dynamic_rotate %48 by %c240_i32_12 dim 1 : vector<4x256xf32>, i32 -> vector<4x256xf32>
    %c1_i32_13 = arith.constant 1 : i32
    %51 = tpu.dynamic_rotate %49 by %c1_i32_13 dim 1 : vector<4x256xf32>, i32 -> vector<4x256xf32>
    %52 = arith.mulf %51, %4 : vector<4x256xf32>
    %53 = arith.mulf %49, %7 : vector<4x256xf32>
    %c255_i32_14 = arith.constant 255 : i32
    %54 = tpu.dynamic_rotate %49 by %c255_i32_14 dim 1 : vector<4x256xf32>, i32 -> vector<4x256xf32>
    %55 = arith.mulf %54, %10 : vector<4x256xf32>
    %c1_i32_15 = arith.constant 1 : i32
    %56 = tpu.dynamic_rotate %48 by %c1_i32_15 dim 1 : vector<4x256xf32>, i32 -> vector<4x256xf32>
    %57 = arith.mulf %56, %13 : vector<4x256xf32>
    %c255_i32_16 = arith.constant 255 : i32
    %58 = tpu.dynamic_rotate %48 by %c255_i32_16 dim 1 : vector<4x256xf32>, i32 -> vector<4x256xf32>
    %59 = arith.mulf %58, %16 : vector<4x256xf32>
    %c1_i32_17 = arith.constant 1 : i32
    %60 = tpu.dynamic_rotate %50 by %c1_i32_17 dim 1 : vector<4x256xf32>, i32 -> vector<4x256xf32>
    %61 = arith.mulf %60, %19 : vector<4x256xf32>
    %62 = arith.mulf %50, %22 : vector<4x256xf32>
    %c255_i32_18 = arith.constant 255 : i32
    %63 = tpu.dynamic_rotate %50 by %c255_i32_18 dim 1 : vector<4x256xf32>, i32 -> vector<4x256xf32>
    %64 = arith.mulf %63, %25 : vector<4x256xf32>
    %65 = tpu.concatenate %52, %53, %55, %57, %48, %59, %61, %62, %64 in 0 : vector<4x256xf32>, vector<4x256xf32>, vector<4x256xf32>, vector<4x256xf32>, vector<4x256xf32>, vector<4x256xf32>, vector<4x256xf32>, vector<4x256xf32>, vector<4x256xf32> -> vector<36x256xf32>
    %66 = arith.truncf %65 : vector<36x256xf32> to vector<36x256xbf16>
    %c0_19 = arith.constant 0 : index
    %c0_20 = arith.constant 0 : index
    %67 = vector.load %arg4[%c0_19, %c0_20] : memref<4x36xbf16, #tpu.memory_space<vmem>>, vector<4x36xbf16>
    %cst_21 = arith.constant dense<0.000000e+00> : vector<4x256xf32>
    %68 = tpu.matmul %67, %66, %cst_21 {dimension_numbers = #tpu.dot_dimension_numbers<[1], [0], [0], [1], [0, 0, 1, 1], [], []>} : vector<4x36xbf16>, vector<36x256xbf16>, vector<4x256xf32> -> vector<4x256xf32>
    %c0_22 = arith.constant 0 : index
    %c0_23 = arith.constant 0 : index
    %69 = vector.load %arg5[%c0_22, %c0_23] : memref<4x1xf32, #tpu.memory_space<vmem>>, vector<4x1xf32>
    %70 = vector.broadcast %69 : vector<4x1xf32> to vector<4x256xf32>
    %71 = arith.addf %68, %70 : vector<4x256xf32>
    %cst_24 = arith.constant 0.000000e+00 : f32
    %72 = vector.broadcast %cst_24 : f32 to vector<4x256xf32>
    %73 = arith.cmpf ogt, %71, %72 : vector<4x256xf32>
    %cst_25 = arith.constant 2.000000e-01 : f32
    %74 = vector.broadcast %cst_25 : f32 to vector<4x256xf32>
    %75 = arith.mulf %74, %71 : vector<4x256xf32>
    %76 = arith.select %73, %71, %75 : vector<4x256xi1>, vector<4x256xf32>
    %c16_i32_26 = arith.constant 16 : i32
    %77 = tpu.dynamic_rotate %76 by %c16_i32_26 dim 1 : vector<4x256xf32>, i32 -> vector<4x256xf32>
    %c240_i32_27 = arith.constant 240 : i32
    %78 = tpu.dynamic_rotate %76 by %c240_i32_27 dim 1 : vector<4x256xf32>, i32 -> vector<4x256xf32>
    %c1_i32_28 = arith.constant 1 : i32
    %79 = tpu.dynamic_rotate %77 by %c1_i32_28 dim 1 : vector<4x256xf32>, i32 -> vector<4x256xf32>
    %80 = arith.mulf %79, %4 : vector<4x256xf32>
    %81 = arith.mulf %77, %7 : vector<4x256xf32>
    %c255_i32_29 = arith.constant 255 : i32
    %82 = tpu.dynamic_rotate %77 by %c255_i32_29 dim 1 : vector<4x256xf32>, i32 -> vector<4x256xf32>
    %83 = arith.mulf %82, %10 : vector<4x256xf32>
    %c1_i32_30 = arith.constant 1 : i32
    %84 = tpu.dynamic_rotate %76 by %c1_i32_30 dim 1 : vector<4x256xf32>, i32 -> vector<4x256xf32>
    %85 = arith.mulf %84, %13 : vector<4x256xf32>
    %c255_i32_31 = arith.constant 255 : i32
    %86 = tpu.dynamic_rotate %76 by %c255_i32_31 dim 1 : vector<4x256xf32>, i32 -> vector<4x256xf32>
    %87 = arith.mulf %86, %16 : vector<4x256xf32>
    %c1_i32_32 = arith.constant 1 : i32
    %88 = tpu.dynamic_rotate %78 by %c1_i32_32 dim 1 : vector<4x256xf32>, i32 -> vector<4x256xf32>
    %89 = arith.mulf %88, %19 : vector<4x256xf32>
    %90 = arith.mulf %78, %22 : vector<4x256xf32>
    %c255_i32_33 = arith.constant 255 : i32
    %91 = tpu.dynamic_rotate %78 by %c255_i32_33 dim 1 : vector<4x256xf32>, i32 -> vector<4x256xf32>
    %92 = arith.mulf %91, %25 : vector<4x256xf32>
    %93 = tpu.concatenate %80, %81, %83, %85, %76, %87, %89, %90, %92 in 0 : vector<4x256xf32>, vector<4x256xf32>, vector<4x256xf32>, vector<4x256xf32>, vector<4x256xf32>, vector<4x256xf32>, vector<4x256xf32>, vector<4x256xf32>, vector<4x256xf32> -> vector<36x256xf32>
    %94 = arith.truncf %93 : vector<36x256xf32> to vector<36x256xbf16>
    %c0_34 = arith.constant 0 : index
    %c0_35 = arith.constant 0 : index
    %95 = vector.load %arg6[%c0_34, %c0_35] : memref<4x36xbf16, #tpu.memory_space<vmem>>, vector<4x36xbf16>
    %cst_36 = arith.constant dense<0.000000e+00> : vector<4x256xf32>
    %96 = tpu.matmul %95, %94, %cst_36 {dimension_numbers = #tpu.dot_dimension_numbers<[1], [0], [0], [1], [0, 0, 1, 1], [], []>} : vector<4x36xbf16>, vector<36x256xbf16>, vector<4x256xf32> -> vector<4x256xf32>
    %c0_37 = arith.constant 0 : index
    %c0_38 = arith.constant 0 : index
    %97 = vector.load %arg7[%c0_37, %c0_38] : memref<4x1xf32, #tpu.memory_space<vmem>>, vector<4x1xf32>
    %98 = vector.broadcast %97 : vector<4x1xf32> to vector<4x256xf32>
    %99 = arith.addf %96, %98 : vector<4x256xf32>
    %100 = arith.addf %0, %99 : vector<4x256xf32>
    %c0_39 = arith.constant 0 : index
    %c0_40 = arith.constant 0 : index
    %101 = vector.load %arg9[%c0_39, %c0_40] : memref<4x256xf32, #tpu.memory_space<vmem>>, vector<4x256xf32>
    tpu.vector_store %arg9[%c0_39, %c0_40], %100 {strides = array<i32>} : memref<4x256xf32, #tpu.memory_space<vmem>>, vector<4x256xf32>,
    return
  }
  func.func @transform_0(%arg0: i32) -> (i32, i32) {
    %c0_i32 = arith.constant 0 : i32
    %c0_i32_0 = arith.constant 0 : i32
    return %c0_i32, %arg0 : i32, i32
  }
  func.func @transform_1(%arg0: i32) -> (i32, i32) {
    %c0_i32 = arith.constant 0 : i32
    %c0_i32_0 = arith.constant 0 : i32
    %c0_i32_1 = arith.constant 0 : i32
    return %c0_i32, %c0_i32_0 : i32, i32
  }
  func.func @transform_2(%arg0: i32) -> (i32, i32) {
    %c0_i32 = arith.constant 0 : i32
    %c0_i32_0 = arith.constant 0 : i32
    %c0_i32_1 = arith.constant 0 : i32
    return %c0_i32, %c0_i32_0 : i32, i32
  }
  func.func @transform_3(%arg0: i32) -> (i32, i32) {
    %c0_i32 = arith.constant 0 : i32
    %c0_i32_0 = arith.constant 0 : i32
    %c0_i32_1 = arith.constant 0 : i32
    return %c0_i32, %c0_i32_0 : i32, i32
  }
  func.func @transform_4(%arg0: i32) -> (i32, i32) {
    %c0_i32 = arith.constant 0 : i32
    %c0_i32_0 = arith.constant 0 : i32
    %c0_i32_1 = arith.constant 0 : i32
    return %c0_i32, %c0_i32_0 : i32, i32
  }
  func.func @transform_5(%arg0: i32) -> (i32, i32) {
    %c0_i32 = arith.constant 0 : i32
    %c0_i32_0 = arith.constant 0 : i32
    %c0_i32_1 = arith.constant 0 : i32
    return %c0_i32, %c0_i32_0 : i32, i32
  }
  func.func @transform_6(%arg0: i32) -> (i32, i32) {
    %c0_i32 = arith.constant 0 : i32
    %c0_i32_0 = arith.constant 0 : i32
    %c0_i32_1 = arith.constant 0 : i32
    return %c0_i32, %c0_i32_0 : i32, i32
  }
  func.func @transform_7(%arg0: i32) -> (i32, i32) {
    %c0_i32 = arith.constant 0 : i32
    %c0_i32_0 = arith.constant 0 : i32
    %c0_i32_1 = arith.constant 0 : i32
    return %c0_i32, %c0_i32_0 : i32, i32
  }
  func.func @transform_8(%arg0: i32) -> (i32, i32) {
    %c0_i32 = arith.constant 0 : i32
    %c0_i32_0 = arith.constant 0 : i32
    return %c0_i32, %arg0 : i32, i32
  }
}

</mosaic_0001>

<llo_original>
// kernel: tpu_custom_call.1
$region0: #{tpu_custom_call.1}
  #allocation0 [shape = 'u32[]', space=smem, size = 0x4, offset = 0x4, fixed_abs, tag = 'smem constant byte address 0x4 - core index']
  #allocation1 [shape = 'u32[144,128]{1,0:T(1,128)}', space=vmem, size = 0x12000, scoped, tag = 'internal scratch']
  %s0 = inlined_call_operand.hbm [shape: f32[4,512], index: 0, kind: input, shape index: {}]
  %s1 = inlined_call_operand.vmem [shape: bf16[4,36], index: 1, kind: input, shape index: {}]
  %s2 = inlined_call_operand.vmem [shape: f32[4,1], index: 2, kind: input, shape index: {}]
  %s3 = inlined_call_operand.vmem [shape: bf16[4,36], index: 3, kind: input, shape index: {}]
  %s4 = inlined_call_operand.vmem [shape: f32[4,1], index: 4, kind: input, shape index: {}]
  %s5 = inlined_call_operand.vmem [shape: bf16[4,36], index: 5, kind: input, shape index: {}]
  %s6 = inlined_call_operand.vmem [shape: f32[4,1], index: 6, kind: input, shape index: {}]
  %s7 = inlined_call_operand.vmem [shape: f32[9,256], index: 7, kind: input, shape index: {}]
  %s8 = inlined_call_operand.hbm [shape: f32[4,512], index: 8, kind: output, shape index: {}]
  %s9 = sld [smem:[#allocation0]]
  $region69: #{tpu_custom_call.1} parent=0
    _
  %s11 = ssub.s32 1, %s9
  %s12 = scalar_select 0, %s11, %s9
  $region1: #{tpu_custom_call.1} parent=0
    #allocation2 [shape = 'u8[8192]{0}', space=vmem, size = 0x2000, scoped, tag = 'input window, operand 0']
    #allocation3 [shape = 's32[2]{0}', space=sflag, size = 0x8, scoped, tag = 'scoped memory for tpu_custom_call.1']
    #allocation4 [shape = 's32[2]{0}', space=sflag, size = 0x8, scoped, tag = 'scoped memory for tpu_custom_call.1']
    #allocation5 [shape = 'u8[8192]{0}', space=vmem, size = 0x2000, scoped, tag = 'output window, operand 0']
    %13 = vsyncpa [#allocation3], 0
    %s14 = scalar_lea.sflag [#allocation3], 1
    %15 = vsyncpa %s14, 0
    %16 = vsyncpa [#allocation4], 0
    %s17 = scalar_lea.sflag [#allocation4], 1
    %18 = vsyncpa %s17, 0
    loop: start=0, step=1, limit=4
    $region2: #{tpu_custom_call.1} parent=1 // loop_pre_header
      _
    $region3: #{tpu_custom_call.1} parent=1 // loop_header
      %s20 = sphi 0, %s24
      %p21 = scmp.ge.s32.totalorder %s20, 4
      %s30 = sphi 0, %s32
      %s33 = sphi 0, %s30
      %s34 = sphi 0, %s33
      %s50 = sphi 0, %s34
      %s54 = sphi 0, %s54
      %s56 = sphi 0, %s54
      %s57 = sphi 0, %s56
      %s71 = sphi 0, %s57
      %s75 = sphi 0, %s75
      %s77 = sphi 0, %s75
      %s78 = sphi 0, %s77
      %s92 = sphi 0, %s78
      %s96 = sphi 0, %s96
      %s98 = sphi 0, %s96
      %s99 = sphi 0, %s98
      %s113 = sphi 0, %s99
      %s117 = sphi 0, %s117
      %s119 = sphi 0, %s117
      %s120 = sphi 0, %s119
      %s134 = sphi 0, %s120
      %s138 = sphi 0, %s138
      %s140 = sphi 0, %s138
      %s141 = sphi 0, %s140
      %s155 = sphi 0, %s141
      %s159 = sphi 0, %s159
      %s161 = sphi 0, %s159
      %s162 = sphi 0, %s161
      %s176 = sphi 0, %s162
      %s180 = sphi 0, %s180
      %s182 = sphi 0, %s180
      %s183 = sphi 0, %s182
      %s197 = sphi 0, %s183
      %s203 = sphi 0, %s205
      %s206 = sphi 0, %s203
      %s207 = sphi 0, %s206
      %s223 = sphi 0, %s207
    $region4: #{tpu_custom_call.1} parent=1 // loop_header_branch
      %23 = sbr.rel (%p21) target = $region8
    $region5: #{tpu_custom_call.1} parent=1 // loop_body
      %s25 = ssub.s32 %s20, 1
      %s26 = ssub.s32 %s20, 2
      %s27 = sadd.s32 %s20, 1
      %s28 = ssub.s32 %s20, %s27
      %p29 = scmp.eq.s32.totalorder %s28, 0
      %s31 = sadd.s32 %s30, 1
      %s32 = scalar_select %p29, %s30, %s31
      %p35 = pneg %p29
      %p36 = scmp.eq.s32.totalorder %s20, 1
      %p37 = por %p35, %p36
      %p38 = scmp.ne.s32.totalorder %s30, %s33
      %p39 = scmp.eq.s32.totalorder %s20, 0
      %p40 = por %p38, %p39
      %p41 = scmp.ne.s32.totalorder %s30, %s33
      %p42 = scmp.eq.s32.totalorder %s25, 1
      %p43 = por %p41, %p42
      %p44 = scmp.ne.s32.totalorder %s33, %s34
      %p45 = scmp.eq.s32.totalorder %s25, 0
      %p46 = por %p44, %p45
      %p47 = scmp.ne.s32.totalorder %s33, %s34
      %p48 = scmp.eq.s32.totalorder %s26, 1
      %p49 = por %p47, %p48
      %p51 = scmp.ne.s32.totalorder %s34, %s50
      %p52 = scmp.eq.s32.totalorder %s26, 0
      %p53 = por %p51, %p52
      %s55 = sadd.s32 %s54, 1
      %p58 = scmp.eq.s32.totalorder %s20, 1
      %p59 = scmp.ne.s32.totalorder %s54, %s56
      %p60 = scmp.eq.s32.totalorder %s20, 0
      %p61 = por %p59, %p60
      %p62 = scmp.ne.s32.totalorder %s54, %s56
      %p63 = scmp.eq.s32.totalorder %s25, 1
      %p64 = por %p62, %p63
      %p65 = scmp.ne.s32.totalorder %s56, %s57
      %p66 = scmp.eq.s32.totalorder %s25, 0
      %p67 = por %p65, %p66
      %p68 = scmp.ne.s32.totalorder %s56, %s57
      %p69 = scmp.eq.s32.totalorder %s26, 1
      %p70 = por %p68, %p69
      %p72 = scmp.ne.s32.totalorder %s57, %s71
      %p73 = scmp.eq.s32.totalorder %s26, 0
      %p74 = por %p72, %p73
      %s76 = sadd.s32 %s75, 1
      %p79 = scmp.eq.s32.totalorder %s20, 1
      %p80 = scmp.ne.s32.totalorder %s75, %s77
      %p81 = scmp.eq.s32.totalorder %s20, 0
      %p82 = por %p80, %p81
      %p83 = scmp.ne.s32.totalorder %s75, %s77
      %p84 = scmp.eq.s32.totalorder %s25, 1
      %p85 = por %p83, %p84
      %p86 = scmp.ne.s32.totalorder %s77, %s78
      %p87 = scmp.eq.s32.totalorder %s25, 0
      %p88 = por %p86, %p87
      %p89 = scmp.ne.s32.totalorder %s77, %s78
      %p90 = scmp.eq.s32.totalorder %s26, 1
      %p91 = por %p89, %p90
      %p93 = scmp.ne.s32.totalorder %s78, %s92
      %p94 = scmp.eq.s32.totalorder %s26, 0
      %p95 = por %p93, %p94
      %s97 = sadd.s32 %s96, 1
      %p100 = scmp.eq.s32.totalorder %s20, 1
      %p101 = scmp.ne.s32.totalorder %s96, %s98
      %p102 = scmp.eq.s32.totalorder %s20, 0
      %p103 = por %p101, %p102
      %p104 = scmp.ne.s32.totalorder %s96, %s98
      %p105 = scmp.eq.s32.totalorder %s25, 1
      %p106 = por %p104, %p105
      %p107 = scmp.ne.s32.totalorder %s98, %s99
      %p108 = scmp.eq.s32.totalorder %s25, 0
      %p109 = por %p107, %p108
      %p110 = scmp.ne.s32.totalorder %s98, %s99
      %p111 = scmp.eq.s32.totalorder %s26, 1
      %p112 = por %p110, %p111
      %p114 = scmp.ne.s32.totalorder %s99, %s113
      %p115 = scmp.eq.s32.totalorder %s26, 0
      %p116 = por %p114, %p115
      %s118 = sadd.s32 %s117, 1
      %p121 = scmp.eq.s32.totalorder %s20, 1
      %p122 = scmp.ne.s32.totalorder %s117, %s119
      %p123 = scmp.eq.s32.totalorder %s20, 0
      %p124 = por %p122, %p123
      %p125 = scmp.ne.s32.totalorder %s117, %s119
      %p126 = scmp.eq.s32.totalorder %s25, 1
      %p127 = por %p125, %p126
      %p128 = scmp.ne.s32.totalorder %s119, %s120
      %p129 = scmp.eq.s32.totalorder %s25, 0
      %p130 = por %p128, %p129
      %p131 = scmp.ne.s32.totalorder %s119, %s120
      %p132 = scmp.eq.s32.totalorder %s26, 1
      %p133 = por %p131, %p132
      %p135 = scmp.ne.s32.totalorder %s120, %s134
      %p136 = scmp.eq.s32.totalorder %s26, 0
      %p137 = por %p135, %p136
      %s139 = sadd.s32 %s138, 1
      %p142 = scmp.eq.s32.totalorder %s20, 1
      %p143 = scmp.ne.s32.totalorder %s138, %s140
      %p144 = scmp.eq.s32.totalorder %s20, 0
      %p145 = por %p143, %p144
      %p146 = scmp.ne.s32.totalorder %s138, %s140
      %p147 = scmp.eq.s32.totalorder %s25, 1
      %p148 = por %p146, %p147
      %p149 = scmp.ne.s32.totalorder %s140, %s141
      %p150 = scmp.eq.s32.totalorder %s25, 0
      %p151 = por %p149, %p150
      %p152 = scmp.ne.s32.totalorder %s140, %s141
      %p153 = scmp.eq.s32.totalorder %s26, 1
      %p154 = por %p152, %p153
      %p156 = scmp.ne.s32.totalorder %s141, %s155
      %p157 = scmp.eq.s32.totalorder %s26, 0
      %p158 = por %p156, %p157
      %s160 = sadd.s32 %s159, 1
      %p163 = scmp.eq.s32.totalorder %s20, 1
      %p164 = scmp.ne.s32.totalorder %s159, %s161
      %p165 = scmp.eq.s32.totalorder %s20, 0
      %p166 = por %p164, %p165
      %p167 = scmp.ne.s32.totalorder %s159, %s161
      %p168 = scmp.eq.s32.totalorder %s25, 1
      %p169 = por %p167, %p168
      %p170 = scmp.ne.s32.totalorder %s161, %s162
      %p171 = scmp.eq.s32.totalorder %s25, 0
      %p172 = por %p170, %p171
      %p173 = scmp.ne.s32.totalorder %s161, %s162
      %p174 = scmp.eq.s32.totalorder %s26, 1
      %p175 = por %p173, %p174
      %p177 = scmp.ne.s32.totalorder %s162, %s176
      %p178 = scmp.eq.s32.totalorder %s26, 0
      %p179 = por %p177, %p178
      %s181 = sadd.s32 %s180, 1
      %p184 = scmp.eq.s32.totalorder %s20, 1
      %p185 = scmp.ne.s32.totalorder %s180, %s182
      %p186 = scmp.eq.s32.totalorder %s20, 0
      %p187 = por %p185, %p186
      %p188 = scmp.ne.s32.totalorder %s180, %s182
      %p189 = scmp.eq.s32.totalorder %s25, 1
      %p190 = por %p188, %p189
      %p191 = scmp.ne.s32.totalorder %s182, %s183
      %p192 = scmp.eq.s32.totalorder %s25, 0
      %p193 = por %p191, %p192
      %p194 = scmp.ne.s32.totalorder %s182, %s183
      %p195 = scmp.eq.s32.totalorder %s26, 1
      %p196 = por %p194, %p195
      %p198 = scmp.ne.s32.totalorder %s183, %s197
      %p199 = scmp.eq.s32.totalorder %s26, 0
      %p200 = por %p198, %p199
      %s201 = ssub.s32 %s20, %s27
      %p202 = scmp.eq.s32.totalorder %s201, 0
      %s204 = sadd.s32 %s203, 1
      %s205 = scalar_select %p202, %s203, %s204
      %p208 = pneg %p202
      %p209 = scmp.eq.s32.totalorder %s20, 1
      %p210 = por %p208, %p209
      %p211 = scmp.ne.s32.totalorder %s203, %s206
      %p212 = scmp.eq.s32.totalorder %s20, 0
      %p213 = por %p211, %p212
      %p214 = scmp.ne.s32.totalorder %s203, %s206
      %p215 = scmp.eq.s32.totalorder %s25, 1
      %p216 = por %p214, %p215
      %p217 = scmp.ne.s32.totalorder %s206, %s207
      %p218 = scmp.eq.s32.totalorder %s25, 0
      %p219 = por %p217, %p218
      %p220 = scmp.ne.s32.totalorder %s206, %s207
      %p221 = scmp.eq.s32.totalorder %s26, 1
      %p222 = por %p220, %p221
      %p224 = scmp.ne.s32.totalorder %s207, %s223
      %p225 = scmp.eq.s32.totalorder %s26, 0
      %p226 = por %p224, %p225
      %p227 = scmp.le.s32.totalorder 1, %s20
      %p228 = scmp.lt.s32.totalorder %s20, 3
      %p229 = pnand %p227, %p228
      %p230 = pneg %p229
      // Predicated region
      $region9: #{tpu_custom_call.1} parent=5 // pred_check
        _
      $region10: #{tpu_custom_call.1} parent=5 // pred_check_branch
        %232 = sbr.rel (%p229) target = $region12
      $region11: #{tpu_custom_call.1} parent=5 // pred_region
        %s233 = ssub.s32 %s20, 1
        // Predicated region
        $region13: #{tpu_custom_call.1} parent=11 // pred_check
          %p234 = pneg %p67
        $region14: #{tpu_custom_call.1} parent=11 // pred_check_branch
          %236 = sbr.rel (%p234) target = $region16
        $region15: #{tpu_custom_call.1} parent=11 // pred_region
          _
        $region16: #{tpu_custom_call.1} parent=11 // pred_fallthru
          _
        // Predicated region
        $region17: #{tpu_custom_call.1} parent=11 // pred_check
          %p237 = pneg %p88
        $region18: #{tpu_custom_call.1} parent=11 // pred_check_branch
          %239 = sbr.rel (%p237) target = $region20
        $region19: #{tpu_custom_call.1} parent=11 // pred_region
          _
        $region20: #{tpu_custom_call.1} parent=11 // pred_fallthru
          _
        // Predicated region
        $region21: #{tpu_custom_call.1} parent=11 // pred_check
          %p240 = pneg %p109
        $region22: #{tpu_custom_call.1} parent=11 // pred_check_branch
          %242 = sbr.rel (%p240) target = $region24
        $region23: #{tpu_custom_call.1} parent=11 // pred_region
          _
        $region24: #{tpu_custom_call.1} parent=11 // pred_fallthru
          _
        // Predicated region
        $region25: #{tpu_custom_call.1} parent=11 // pred_check
          %p243 = pneg %p130
        $region26: #{tpu_custom_call.1} parent=11 // pred_check_branch
          %245 = sbr.rel (%p243) target = $region28
        $region27: #{tpu_custom_call.1} parent=11 // pred_region
          _
        $region28: #{tpu_custom_call.1} parent=11 // pred_fallthru
          _
        // Predicated region
        $region29: #{tpu_custom_call.1} parent=11 // pred_check
          %p246 = pneg %p151
        $region30: #{tpu_custom_call.1} parent=11 // pred_check_branch
          %248 = sbr.rel (%p246) target = $region32
        $region31: #{tpu_custom_call.1} parent=11 // pred_region
          _
        $region32: #{tpu_custom_call.1} parent=11 // pred_fallthru
          _
        // Predicated region
        $region33: #{tpu_custom_call.1} parent=11 // pred_check
          %p249 = pneg %p172
        $region34: #{tpu_custom_call.1} parent=11 // pred_check_branch
          %251 = sbr.rel (%p249) target = $region36
        $region35: #{tpu_custom_call.1} parent=11 // pred_region
          _
        $region36: #{tpu_custom_call.1} parent=11 // pred_fallthru
          _
        // Predicated region
        $region37: #{tpu_custom_call.1} parent=11 // pred_check
          %p252 = pneg %p193
        $region38: #{tpu_custom_call.1} parent=11 // pred_check_branch
          %254 = sbr.rel (%p252) target = $region40
        $region39: #{tpu_custom_call.1} parent=11 // pred_region
          _
        $region40: #{tpu_custom_call.1} parent=11 // pred_fallthru
          _
      $region12: #{tpu_custom_call.1} parent=5 // pred_fallthru
        _
      %p255 = scmp.lt.s32.totalorder %s20, 2
      // Predicated region
      $region41: #{tpu_custom_call.1} parent=5 // pred_check
        %p256 = pneg %p255
      $region42: #{tpu_custom_call.1} parent=5 // pred_check_branch
        %258 = sbr.rel (%p256) target = $region44
      $region43: #{tpu_custom_call.1} parent=5 // pred_region
        // Predicated region
        $region45: #{tpu_custom_call.1} parent=43 // pred_check
          %p259 = pneg %p40
        $region46: #{tpu_custom_call.1} parent=43 // pred_check_branch
          %261 = sbr.rel (%p259) target = $region48
        $region47: #{tpu_custom_call.1} parent=43 // pred_region
          %s262 = sand.u32 %s30, 1
          %s263 = scalar_lea.sflag [#allocation3], %s262
          %s264 = sand.u32 %s30, 1
          %s265 = smul.addr %s264, 8
          %s266 = scalar_lea.vmem [#allocation2], %s265
          %s267 = smul.u32 2, %s20
          %s269 = ssub.s32 128, 128
          %270 = vsyncadd %s263, %s269
          %s271 = smul.addr %s267, 64
          %s272 = scalar_lea.hbm %s0, %s271
          %s274 = sshll.u32 %s266, 4
          %s275 = int_to_ptr.vmem [resolvable:$true] %s274
          %277 = dma.hbm_to_vmem [thread:$0]  %s272, 128, %s275, %s263
        $region48: #{tpu_custom_call.1} parent=43 // pred_fallthru
          _
      $region44: #{tpu_custom_call.1} parent=5 // pred_fallthru
        _
      %p278 = scmp.le.s32.totalorder 1, %s20
      %p279 = scmp.lt.s32.totalorder %s20, 3
      %p280 = pnand %p278, %p279
      %p281 = pneg %p280
      // Predicated region
      $region49: #{tpu_custom_call.1} parent=5 // pred_check
        _
      $region50: #{tpu_custom_call.1} parent=5 // pred_check_branch
        %283 = sbr.rel (%p280) target = $region52
      $region51: #{tpu_custom_call.1} parent=5 // pred_region
        %s284 = ssub.s32 %s20, 1
        %s285 = sand.u32 %s33, 1
        %s286 = scalar_lea.sflag [#allocation3], %s285
        %s287 = sand.u32 %s33, 1
        %s288 = smul.addr %s287, 8
        %s289 = scalar_lea.vmem [#allocation2], %s288
        // Predicated region
        $region53: #{tpu_custom_call.1} parent=51 // pred_check
          %p290 = pneg %p46
        $region54: #{tpu_custom_call.1} parent=51 // pred_check_branch
          %292 = sbr.rel (%p290) target = $region56
        $region55: #{tpu_custom_call.1} parent=51 // pred_region
          %293 = dma.done %s286, 128
        $region56: #{tpu_custom_call.1} parent=51 // pred_fallthru
          _
        %s294 = sand.u32 %s33, 1
        %s295 = scalar_lea.sflag [#allocation3], %s294
        %s296 = sand.u32 %s33, 1
        %s297 = smul.addr %s296, 8
        %s298 = scalar_lea.vmem [#allocation2], %s297
        %p299 = pneg %p46
        %p300 = pneg %p43
        %p301 = pneg %p67
        %p302 = pneg %p64
        %p303 = pneg %p88
        %p304 = pneg %p85
        %p305 = pneg %p109
        %p306 = pneg %p106
        %p307 = pneg %p130
        %p308 = pneg %p127
        %p309 = pneg %p151
        %p310 = pneg %p148
        %p311 = pneg %p172
        %p312 = pneg %p169
        %p313 = pneg %p193
        %p314 = pneg %p190
        %p315 = pneg %p219
        %p316 = pneg %p216
        %s317 = sand.u32 %s206, 1
        %s318 = scalar_lea.sflag [#allocation4], %s317
        %s319 = sand.u32 %s206, 1
        %s320 = smul.addr %s319, 8
        %s321 = scalar_lea.vmem [#allocation5], %s320
        %s322 = smul.u32 2, %s25
        %s323 = smul.u32 2, %s25
        %v325 = vld [vmem:[%s289] sm:$0xff]
        %v326 = vld [vmem:[%s7] sm:$0xff]
        %v327 = vld [vmem:[%s7 + $0x8] sm:$0xff]
        %v328 = vld [vmem:[%s7 + $0x10] sm:$0x1]
        %v329 = vld [vmem:[%s7 + $0x18] sm:$0x1]
        %v330 = vlaneseq
        %v331 = vshrl.u32 %v330, 7
        %v332 = vsub.s32 0, %v331
        %v333 = vrot.slane %v326, %v332
        %v334 = vlaneseq
        %v335 = vshrl.u32 %v334, 7
        %v336 = vsub.s32 0, %v335
        %v337 = vrot.slane %v327, %v336
        %v338 = vlaneseq
        %v339 = vshrl.u32 %v338, 7
        %v340 = vsub.s32 1, %v339
        %v341 = vrot.slane %v326, %v340
        %v342 = vlaneseq
        %v343 = vshrl.u32 %v342, 7
        %v344 = vsub.s32 1, %v343
        %v345 = vrot.slane %v327, %v344
        %v346 = vlaneseq
        %v347 = vshrl.u32 %v346, 7
        %v348 = vsub.s32 2, %v347
        %v349 = vrot.slane %v326, %v348
        %v350 = vlaneseq
        %v351 = vshrl.u32 %v350, 7
        %v352 = vsub.s32 2, %v351
        %v353 = vrot.slane %v327, %v352
        %v354 = vlaneseq
        %v355 = vshrl.u32 %v354, 7
        %v356 = vsub.s32 3, %v355
        %v357 = vrot.slane %v326, %v356
        %v358 = vlaneseq
        %v359 = vshrl.u32 %v358, 7
        %v360 = vsub.s32 3, %v359
        %v361 = vrot.slane %v327, %v360
        %v362 = vlaneseq
        %v363 = vshrl.u32 %v362, 7
        %v364 = vsub.s32 5, %v363
        %v365 = vrot.slane %v326, %v364
        %v366 = vlaneseq
        %v367 = vshrl.u32 %v366, 7
        %v368 = vsub.s32 5, %v367
        %v369 = vrot.slane %v327, %v368
        %v370 = vlaneseq
        %v371 = vshrl.u32 %v370, 7
        %v372 = vsub.s32 6, %v371
        %v373 = vrot.slane %v326, %v372
        %v374 = vlaneseq
        %v375 = vshrl.u32 %v374, 7
        %v376 = vsub.s32 6, %v375
        %v377 = vrot.slane %v327, %v376
        %v378 = vlaneseq
        %v379 = vshrl.u32 %v378, 7
        %v380 = vsub.s32 7, %v379
        %v381 = vrot.slane %v326, %v380
        %v382 = vlaneseq
        %v383 = vshrl.u32 %v382, 7
        %v384 = vsub.s32 7, %v383
        %v385 = vrot.slane %v327, %v384
        %v386 = vlaneseq
        %v387 = vshrl.u32 %v386, 7
        %v388 = vsub.s32 0, %v387
        %v389 = vrot.slane %v328, %v388
        %v390 = vlaneseq
        %v391 = vshrl.u32 %v390, 7
        %v392 = vsub.s32 0, %v391
        %v393 = vrot.slane %v329, %v392
        %v395 = vcombine.high %v325, %v325
        %397 = vrot.lane.b32.xlu0 %v325, 16
        %v398 = vpop.permute.xlu0 %397
        %399 = vrot.lane.b32.xlu0 %v395, 16
        %v400 = vpop.permute.xlu0 %399
        %v401 = vlaneseq
        %v402 = vand.u32 %v401, 127
        %vm403 = vcmp.lt.s32.totalorder %v402, 16
        %v404 = vsel %vm403, %v398, %v400
        %v405 = vsel %vm403, %v400, %v398
        %406 = vrot.lane.b32.xlu0 %v325, 112
        %v407 = vpop.permute.xlu0 %406
        %408 = vrot.lane.b32.xlu0 %v395, 112
        %v409 = vpop.permute.xlu0 %408
        %vm410 = vcmp.lt.s32.totalorder %v402, 112
        %v411 = vsel %vm410, %v407, %v409
        %v412 = vsel %vm410, %v409, %v407
        %413 = vrot.lane.b32.xlu0 %v405, 1
        %v414 = vpop.permute.xlu0 %413
        %415 = vrot.lane.b32.xlu0 %v404, 1
        %v416 = vpop.permute.xlu0 %415
        %vm417 = vcmp.lt.s32.totalorder %v402, 1
        %v418 = vsel %vm417, %v414, %v416
        %v419 = vsel %vm417, %v416, %v414
        %v420 = vmul.f32 %v419, %v333
        %v421 = vmul.f32 %v418, %v337
        %v422 = vmul.f32 %v405, %v341
        %v423 = vmul.f32 %v404, %v345
        %424 = vrot.lane.b32.xlu0 %v405, 127
        %v425 = vpop.permute.xlu0 %424
        %426 = vrot.lane.b32.xlu0 %v404, 127
        %v427 = vpop.permute.xlu0 %426
        %vm428 = vcmp.lt.s32.totalorder %v402, 127
        %v429 = vsel %vm428, %v425, %v427
        %v430 = vsel %vm428, %v427, %v425
        %v431 = vmul.f32 %v429, %v349
        %v432 = vmul.f32 %v430, %v353
        %433 = vrot.lane.b32.xlu0 %v325, 1
        %v434 = vpop.permute.xlu0 %433
        %435 = vrot.lane.b32.xlu0 %v395, 1
        %v436 = vpop.permute.xlu0 %435
        %v437 = vsel %vm417, %v434, %v436
        %v438 = vsel %vm417, %v436, %v434
        %v439 = vmul.f32 %v438, %v357
        %v440 = vmul.f32 %v437, %v361
        %441 = vrot.lane.b32.xlu0 %v325, 127
        %v442 = vpop.permute.xlu0 %441
        %443 = vrot.lane.b32.xlu0 %v395, 127
        %v444 = vpop.permute.xlu0 %443
        %v445 = vsel %vm428, %v442, %v444
        %v446 = vsel %vm428, %v444, %v442
        %v447 = vmul.f32 %v445, %v365
        %v448 = vmul.f32 %v446, %v369
        %449 = vrot.lane.b32.xlu0 %v411, 1
        %v450 = vpop.permute.xlu0 %449
        %451 = vrot.lane.b32.xlu0 %v412, 1
        %v452 = vpop.permute.xlu0 %451
        %v453 = vsel %vm417, %v450, %v452
        %v454 = vsel %vm417, %v452, %v450
        %v455 = vmul.f32 %v454, %v373
        %v456 = vmul.f32 %v453, %v377
        %v457 = vmul.f32 %v411, %v381
        %v458 = vmul.f32 %v412, %v385
        %459 = vrot.lane.b32.xlu0 %v411, 127
        %v460 = vpop.permute.xlu0 %459
        %461 = vrot.lane.b32.xlu0 %v412, 127
        %v462 = vpop.permute.xlu0 %461
        %v463 = vsel %vm428, %v460, %v462
        %v464 = vsel %vm428, %v462, %v460
        %v465 = vmul.f32 %v463, %v389
        %v466 = vmul.f32 %v464, %v393
        %v469 = vrot.slane %v422, 4
        %v470 = vrot.slane %v423, 4
        %v475 = vrot.slane %v439, 4
        %v476 = vrot.slane %v440, 4
        %v481 = vrot.slane %v447, 4
        %v482 = vrot.slane %v448, 4
        %v487 = vrot.slane %v457, 4
        %v488 = vrot.slane %v458, 4
        %vm491 = vcmask 1043456
        %v492 = vsel %vm491, %v420, %v469
        %v493 = vsel %vm491, %v421, %v470
        %v494 = vsel %vm491, %v431, %v475
        %v495 = vsel %vm491, %v432, %v476
        %v496 = vsel %vm491, %v325, %v481
        %v497 = vsel %vm491, %v395, %v482
        %v498 = vsel %vm491, %v455, %v487
        %v499 = vsel %vm491, %v456, %v488
        %v500 = vpack.c.bf16 %v494, %v492
        %v501 = vpack.c.bf16 %v495, %v493
        %v502 = vpack.c.bf16 %v498, %v496
        %v503 = vpack.c.bf16 %v499, %v497
        %v504 = vpack.c.bf16 %v465, %v465
        %v505 = vpack.c.bf16 %v466, %v466
        %v506 = vld [vmem:[%s1] sm:$0x3]
        %v507 = vld [vmem:[%s2] sm:$0xf]
        %509 = vset.pattern.permute.xlu0 0
        %510 = vperm.xlu0 %509, %v507
        %v511 = vpop.permute.xlu0 %510
        %vm513 = vcmask 293888
        %v515 = vsel %vm513, %v506, 0
        %vm517 = vcmask 1041408
        %v519 = vsel %vm517, %v504, 0
        %v522 = vsel %vm517, %v505, 0
        %524 = vmatprep.subr.bf16.mxu0 %v501
        %525 = vmatpush1.bf16.msra.mxu0 %v500
        %526 = vmatprep.subr.bf16.mxu0 %v503
        %527 = vmatpush1.bf16.msra.mxu0 %v502
        %528 = vmatprep.subr.bf16.mxu0 %v522
        %529 = vmatpush1.bf16.msra.mxu0 %v519
        %530 = vmatprep.subr.bf16.mxu0 0
        %531 = vmatpush1.bf16.msra.mxu0 0
        %532 = vmatprep.subr.bf16.mxu0 0
        %533 = vmatpush1.bf16.msra.mxu0 0
        %534 = vmatprep.subr.bf16.mxu0 0
        %535 = vmatpush1.bf16.msra.mxu0 0
        %536 = vmatprep.subr.bf16.mxu0 0
        %537 = vmatpush1.bf16.msra.mxu0 0
        %538 = vmatprep.subr.bf16.mxu0 0
        %539 = vmatpush1.bf16.msra.mxu0 0
        %540 = vmatprep.subr.bf16.mxu0 0
        %541 = vmatpush1.bf16.msra.mxu0 0
        %542 = vmatprep.subr.bf16.mxu0 0
        %543 = vmatpush1.bf16.msra.mxu0 0
        %544 = vmatprep.subr.bf16.mxu0 0
        %545 = vmatpush1.bf16.msra.mxu0 0
        %546 = vmatprep.subr.bf16.mxu0 0
        %547 = vmatpush1.bf16.msra.mxu0 0
        %548 = vmatprep.subr.bf16.mxu0 0
        %549 = vmatpush1.bf16.msra.mxu0 0
        %550 = vmatprep.subr.bf16.mxu0 0
        %551 = vmatpush1.bf16.msra.mxu0 0
        %552 = vmatprep.subr.bf16.mxu0 0
        %553 = vmatpush1.bf16.msra.mxu0 0
        %554 = vmatprep.subr.bf16.mxu0 0
        %555 = vmatpush1.bf16.msra.mxu0 0
        %556 = vmatprep.mubr.bf16.mxu0 0
        %557 = vmatmul.mubr.bf16.gmra.mrb[0].mxu0 %v515
        %v558 = vpop.f32.mrb[0].mxu0
        %v559 = vadd.f32 %v511, %v558
        %v560 = vpop.f32.mrb[0].mxu0
        %v561 = vadd.f32 %v511, %v560
        %v562 = vpop.f32.mrb[0].mxu0
        %v563 = vpop.f32.mrb[0].mxu0
        %564 = vdwg.mxu0
        %565 = vrot.lane.b32.xlu0 %v559, 16
        %v566 = vpop.permute.xlu0 %565
        %567 = vrot.lane.b32.xlu0 %v561, 16
        %v568 = vpop.permute.xlu0 %567
        %v569 = vsel %vm403, %v566, %v568
        %v570 = vsel %vm403, %v568, %v566
        %571 = vrot.lane.b32.xlu0 %v559, 112
        %v572 = vpop.permute.xlu0 %571
        %573 = vrot.lane.b32.xlu0 %v561, 112
        %v574 = vpop.permute.xlu0 %573
        %v575 = vsel %vm410, %v572, %v574
        %v576 = vsel %vm410, %v574, %v572
        %577 = vrot.lane.b32.xlu0 %v570, 1
        %v578 = vpop.permute.xlu0 %577
        %579 = vrot.lane.b32.xlu0 %v569, 1
        %v580 = vpop.permute.xlu0 %579
        %v581 = vsel %vm417, %v578, %v580
        %v582 = vsel %vm417, %v580, %v578
        %v583 = vmul.f32 %v582, %v333
        %v584 = vmul.f32 %v581, %v337
        %v585 = vmul.f32 %v570, %v341
        %v586 = vmul.f32 %v569, %v345
        %587 = vrot.lane.b32.xlu0 %v570, 127
        %v588 = vpop.permute.xlu0 %587
        %589 = vrot.lane.b32.xlu0 %v569, 127
        %v590 = vpop.permute.xlu0 %589
        %v591 = vsel %vm428, %v588, %v590
        %v592 = vsel %vm428, %v590, %v588
        %v593 = vmul.f32 %v591, %v349
        %v594 = vmul.f32 %v592, %v353
        %595 = vrot.lane.b32.xlu0 %v559, 1
        %v596 = vpop.permute.xlu0 %595
        %597 = vrot.lane.b32.xlu0 %v561, 1
        %v598 = vpop.permute.xlu0 %597
        %v599 = vsel %vm417, %v596, %v598
        %v600 = vsel %vm417, %v598, %v596
        %v601 = vmul.f32 %v600, %v357
        %v602 = vmul.f32 %v599, %v361
        %603 = vrot.lane.b32.xlu0 %v559, 127
        %v604 = vpop.permute.xlu0 %603
        %605 = vrot.lane.b32.xlu0 %v561, 127
        %v606 = vpop.permute.xlu0 %605
        %v607 = vsel %vm428, %v604, %v606
        %v608 = vsel %vm428, %v606, %v604
        %v609 = vmul.f32 %v607, %v365
        %v610 = vmul.f32 %v608, %v369
        %611 = vrot.lane.b32.xlu0 %v575, 1
        %v612 = vpop.permute.xlu0 %611
        %613 = vrot.lane.b32.xlu0 %v576, 1
        %v614 = vpop.permute.xlu0 %613
        %v615 = vsel %vm417, %v612, %v614
        %v616 = vsel %vm417, %v614, %v612
        %v617 = vmul.f32 %v616, %v373
        %v618 = vmul.f32 %v615, %v377
        %v619 = vmul.f32 %v575, %v381
        %v620 = vmul.f32 %v576, %v385
        %621 = vrot.lane.b32.xlu0 %v575, 127
        %v622 = vpop.permute.xlu0 %621
        %623 = vrot.lane.b32.xlu0 %v576, 127
        %v624 = vpop.permute.xlu0 %623
        %v625 = vsel %vm428, %v622, %v624
        %v626 = vsel %vm428, %v624, %v622
        %v627 = vmul.f32 %v625, %v389
        %v628 = vmul.f32 %v626, %v393
        %v631 = vrot.slane %v585, 4
        %v632 = vrot.slane %v586, 4
        %v637 = vrot.slane %v601, 4
        %v638 = vrot.slane %v602, 4
        %v643 = vrot.slane %v609, 4
        %v644 = vrot.slane %v610, 4
        %v649 = vrot.slane %v619, 4
        %v650 = vrot.slane %v620, 4
        %v653 = vsel %vm491, %v583, %v631
        %v654 = vsel %vm491, %v584, %v632
        %v655 = vsel %vm491, %v593, %v637
        %v656 = vsel %vm491, %v594, %v638
        %v657 = vsel %vm491, %v559, %v643
        %v658 = vsel %vm491, %v561, %v644
        %v659 = vsel %vm491, %v617, %v649
        %v660 = vsel %vm491, %v618, %v650
        %v661 = vpack.c.bf16 %v655, %v653
        %v662 = vpack.c.bf16 %v656, %v654
        %v663 = vpack.c.bf16 %v659, %v657
        %v664 = vpack.c.bf16 %v660, %v658
        %v665 = vpack.c.bf16 %v627, %v627
        %v666 = vpack.c.bf16 %v628, %v628
        %v667 = vld [vmem:[%s3] sm:$0x3]
        %v668 = vld [vmem:[%s4] sm:$0xf]
        %670 = vset.pattern.permute.xlu0 0
        %671 = vperm.xlu0 %670, %v668
        %v672 = vpop.permute.xlu0 %671
        %v675 = vsel %vm513, %v667, 0
        %v678 = vsel %vm517, %v665, 0
        %v681 = vsel %vm517, %v666, 0
        %683 = vmatprep.subr.bf16.mxu0 %v662
        %684 = vmatpush1.bf16.msra.mxu0 %v661
        %685 = vmatprep.subr.bf16.mxu0 %v664
        %686 = vmatpush1.bf16.msra.mxu0 %v663
        %687 = vmatprep.subr.bf16.mxu0 %v681
        %688 = vmatpush1.bf16.msra.mxu0 %v678
        %689 = vmatprep.subr.bf16.mxu0 0
        %690 = vmatpush1.bf16.msra.mxu0 0
        %691 = vmatprep.subr.bf16.mxu0 0
        %692 = vmatpush1.bf16.msra.mxu0 0
        %693 = vmatprep.subr.bf16.mxu0 0
        %694 = vmatpush1.bf16.msra.mxu0 0
        %695 = vmatprep.subr.bf16.mxu0 0
        %696 = vmatpush1.bf16.msra.mxu0 0
        %697 = vmatprep.subr.bf16.mxu0 0
        %698 = vmatpush1.bf16.msra.mxu0 0
        %699 = vmatprep.subr.bf16.mxu0 0
        %700 = vmatpush1.bf16.msra.mxu0 0
        %701 = vmatprep.subr.bf16.mxu0 0
        %702 = vmatpush1.bf16.msra.mxu0 0
        %703 = vmatprep.subr.bf16.mxu0 0
        %704 = vmatpush1.bf16.msra.mxu0 0
        %705 = vmatprep.subr.bf16.mxu0 0
        %706 = vmatpush1.bf16.msra.mxu0 0
        %707 = vmatprep.subr.bf16.mxu0 0
        %708 = vmatpush1.bf16.msra.mxu0 0
        %709 = vmatprep.subr.bf16.mxu0 0
        %710 = vmatpush1.bf16.msra.mxu0 0
        %711 = vmatprep.subr.bf16.mxu0 0
        %712 = vmatpush1.bf16.msra.mxu0 0
        %713 = vmatprep.subr.bf16.mxu0 0
        %714 = vmatpush1.bf16.msra.mxu0 0
        %715 = vmatprep.mubr.bf16.mxu0 0
        %716 = vmatmul.mubr.bf16.gmra.mrb[0].mxu0 %v675
        %v717 = vpop.f32.mrb[0].mxu0
        %v718 = vadd.f32 %v672, %v717
        %v719 = vpop.f32.mrb[0].mxu0
        %v720 = vadd.f32 %v672, %v719
        %v721 = vpop.f32.mrb[0].mxu0
        %v722 = vpop.f32.mrb[0].mxu0
        %723 = vdwg.mxu0
        %vm724 = vcmp.gt.f32.partialorder %v718, 0.0
        %vm725 = vcmp.gt.f32.partialorder %v720, 0.0
        %v726 = vmul.f32 %v718, 0.2
        %v727 = vmul.f32 %v720, 0.2
        %v728 = vsel %vm724, %v718, %v726
        %v729 = vsel %vm725, %v720, %v727
        %730 = vrot.lane.b32.xlu0 %v728, 16
        %v731 = vpop.permute.xlu0 %730
        %732 = vrot.lane.b32.xlu0 %v729, 16
        %v733 = vpop.permute.xlu0 %732
        %v734 = vsel %vm403, %v731, %v733
        %v735 = vsel %vm403, %v733, %v731
        %736 = vrot.lane.b32.xlu0 %v728, 112
        %v737 = vpop.permute.xlu0 %736
        %738 = vrot.lane.b32.xlu0 %v729, 112
        %v739 = vpop.permute.xlu0 %738
        %v740 = vsel %vm410, %v737, %v739
        %v741 = vsel %vm410, %v739, %v737
        %742 = vrot.lane.b32.xlu0 %v735, 1
        %v743 = vpop.permute.xlu0 %742
        %744 = vrot.lane.b32.xlu0 %v734, 1
        %v745 = vpop.permute.xlu0 %744
        %v746 = vsel %vm417, %v743, %v745
        %v747 = vsel %vm417, %v745, %v743
        %v748 = vmul.f32 %v747, %v333
        %v749 = vmul.f32 %v746, %v337
        %v750 = vmul.f32 %v735, %v341
        %v751 = vmul.f32 %v734, %v345
        %752 = vrot.lane.b32.xlu0 %v735, 127
        %v753 = vpop.permute.xlu0 %752
        %754 = vrot.lane.b32.xlu0 %v734, 127
        %v755 = vpop.permute.xlu0 %754
        %v756 = vsel %vm428, %v753, %v755
        %v757 = vsel %vm428, %v755, %v753
        %v758 = vmul.f32 %v756, %v349
        %v759 = vmul.f32 %v757, %v353
        %760 = vrot.lane.b32.xlu0 %v728, 1
        %v761 = vpop.permute.xlu0 %760
        %762 = vrot.lane.b32.xlu0 %v729, 1
        %v763 = vpop.permute.xlu0 %762
        %v764 = vsel %vm417, %v761, %v763
        %v765 = vsel %vm417, %v763, %v761
        %v766 = vmul.f32 %v765, %v357
        %v767 = vmul.f32 %v764, %v361
        %768 = vrot.lane.b32.xlu0 %v728, 127
        %v769 = vpop.permute.xlu0 %768
        %770 = vrot.lane.b32.xlu0 %v729, 127
        %v771 = vpop.permute.xlu0 %770
        %v772 = vsel %vm428, %v769, %v771
        %v773 = vsel %vm428, %v771, %v769
        %v774 = vmul.f32 %v772, %v365
        %v775 = vmul.f32 %v773, %v369
        %776 = vrot.lane.b32.xlu0 %v740, 1
        %v777 = vpop.permute.xlu0 %776
        %778 = vrot.lane.b32.xlu0 %v741, 1
        %v779 = vpop.permute.xlu0 %778
        %v780 = vsel %vm417, %v777, %v779
        %v781 = vsel %vm417, %v779, %v777
        %v782 = vmul.f32 %v781, %v373
        %v783 = vmul.f32 %v780, %v377
        %v784 = vmul.f32 %v740, %v381
        %v785 = vmul.f32 %v741, %v385
        %786 = vrot.lane.b32.xlu0 %v740, 127
        %v787 = vpop.permute.xlu0 %786
        %788 = vrot.lane.b32.xlu0 %v741, 127
        %v789 = vpop.permute.xlu0 %788
        %v790 = vsel %vm428, %v787, %v789
        %v791 = vsel %vm428, %v789, %v787
        %v792 = vmul.f32 %v790, %v389
        %v793 = vmul.f32 %v791, %v393
        %v796 = vrot.slane %v750, 4
        %v797 = vrot.slane %v751, 4
        %v802 = vrot.slane %v766, 4
        %v803 = vrot.slane %v767, 4
        %v808 = vrot.slane %v774, 4
        %v809 = vrot.slane %v775, 4
        %v814 = vrot.slane %v784, 4
        %v815 = vrot.slane %v785, 4
        %v818 = vsel %vm491, %v748, %v796
        %v819 = vsel %vm491, %v749, %v797
        %v820 = vsel %vm491, %v758, %v802
        %v821 = vsel %vm491, %v759, %v803
        %v822 = vsel %vm491, %v728, %v808
        %v823 = vsel %vm491, %v729, %v809
        %v824 = vsel %vm491, %v782, %v814
        %v825 = vsel %vm491, %v783, %v815
        %v826 = vpack.c.bf16 %v820, %v818
        %v827 = vpack.c.bf16 %v821, %v819
        %v828 = vpack.c.bf16 %v824, %v822
        %v829 = vpack.c.bf16 %v825, %v823
        %v830 = vpack.c.bf16 %v792, %v792
        %v831 = vpack.c.bf16 %v793, %v793
        %v832 = vld [vmem:[%s5] sm:$0x3]
        %v833 = vld [vmem:[%s6] sm:$0xf]
        %835 = vset.pattern.permute.xlu0 0
        %836 = vperm.xlu0 %835, %v833
        %v837 = vpop.permute.xlu0 %836
        %v840 = vsel %vm513, %v832, 0
        %v843 = vsel %vm517, %v830, 0
        %v846 = vsel %vm517, %v831, 0
        %848 = vmatprep.subr.bf16.mxu0 %v827
        %849 = vmatpush1.bf16.msra.mxu0 %v826
        %850 = vmatprep.subr.bf16.mxu0 %v829
        %851 = vmatpush1.bf16.msra.mxu0 %v828
        %852 = vmatprep.subr.bf16.mxu0 %v846
        %853 = vmatpush1.bf16.msra.mxu0 %v843
        %854 = vmatprep.subr.bf16.mxu0 0
        %855 = vmatpush1.bf16.msra.mxu0 0
        %856 = vmatprep.subr.bf16.mxu0 0
        %857 = vmatpush1.bf16.msra.mxu0 0
        %858 = vmatprep.subr.bf16.mxu0 0
        %859 = vmatpush1.bf16.msra.mxu0 0
        %860 = vmatprep.subr.bf16.mxu0 0
        %861 = vmatpush1.bf16.msra.mxu0 0
        %862 = vmatprep.subr.bf16.mxu0 0
        %863 = vmatpush1.bf16.msra.mxu0 0
        %864 = vmatprep.subr.bf16.mxu0 0
        %865 = vmatpush1.bf16.msra.mxu0 0
        %866 = vmatprep.subr.bf16.mxu0 0
        %867 = vmatpush1.bf16.msra.mxu0 0
        %868 = vmatprep.subr.bf16.mxu0 0
        %869 = vmatpush1.bf16.msra.mxu0 0
        %870 = vmatprep.subr.bf16.mxu0 0
        %871 = vmatpush1.bf16.msra.mxu0 0
        %872 = vmatprep.subr.bf16.mxu0 0
        %873 = vmatpush1.bf16.msra.mxu0 0
        %874 = vmatprep.subr.bf16.mxu0 0
        %875 = vmatpush1.bf16.msra.mxu0 0
        %876 = vmatprep.subr.bf16.mxu0 0
        %877 = vmatpush1.bf16.msra.mxu0 0
        %878 = vmatprep.subr.bf16.mxu0 0
        %879 = vmatpush1.bf16.msra.mxu0 0
        %880 = vmatprep.mubr.bf16.mxu0 0
        %881 = vmatmul.mubr.bf16.gmra.mrb[0].mxu0 %v840
        %v882 = vpop.f32.mrb[0].mxu0
        %v883 = vadd.f32 %v837, %v882
        %v884 = vpop.f32.mrb[0].mxu0
        %v885 = vadd.f32 %v837, %v884
        %v886 = vpop.f32.mrb[0].mxu0
        %v887 = vpop.f32.mrb[0].mxu0
        %888 = vdwg.mxu0
        %v891 = vcombine.low %v883, %v885
        %v893 = vadd.f32 %v325, %v891
        %894 = vst [vmem:[%s321] sm:$0xff] %v893
        %s895 = sand.u32 %s206, 1
        %s896 = scalar_lea.sflag [#allocation4], %s895
        %s897 = sand.u32 %s206, 1
        %s898 = smul.addr %s897, 8
        %s899 = scalar_lea.vmem [#allocation5], %s898
        // Predicated region
        $region57: #{tpu_custom_call.1} parent=51 // pred_check
          %p900 = pneg %p216
        $region58: #{tpu_custom_call.1} parent=51 // pred_check_branch
          %902 = sbr.rel (%p900) target = $region60
        $region59: #{tpu_custom_call.1} parent=51 // pred_region
          %s903 = smul.u32 2, %s25
          %s905 = ssub.s32 128, 128
          %906 = vsyncadd %s896, %s905
          %s907 = smul.addr %s903, 64
          %s908 = scalar_lea.hbm %s8, %s907
          %s910 = sshll.u32 %s899, 4
          %s911 = int_to_ptr.vmem [resolvable:$true] %s910
          %913 = dma.vmem_to_hbm [thread:$0]  %s911, 128, %s908, %s896
        $region60: #{tpu_custom_call.1} parent=51 // pred_fallthru
          _
      $region52: #{tpu_custom_call.1} parent=5 // pred_fallthru
        _
      %p914 = scmp.le.s32.totalorder 2, %s20
      // Predicated region
      $region61: #{tpu_custom_call.1} parent=5 // pred_check
        %p915 = pneg %p914
      $region62: #{tpu_custom_call.1} parent=5 // pred_check_branch
        %917 = sbr.rel (%p915) target = $region64
      $region63: #{tpu_custom_call.1} parent=5 // pred_region
        %s918 = ssub.s32 %s20, 2
        // Predicated region
        $region65: #{tpu_custom_call.1} parent=63 // pred_check
          %p919 = pneg %p222
        $region66: #{tpu_custom_call.1} parent=63 // pred_check_branch
          %921 = sbr.rel (%p919) target = $region68
        $region67: #{tpu_custom_call.1} parent=63 // pred_region
          %s922 = sand.u32 %s207, 1
          %s923 = scalar_lea.sflag [#allocation4], %s922
          %s924 = sand.u32 %s207, 1
          %s925 = smul.addr %s924, 8
          %s926 = scalar_lea.vmem [#allocation5], %s925
          %927 = dma.done %s923, 128
        $region68: #{tpu_custom_call.1} parent=63 // pred_fallthru
          _
      $region64: #{tpu_custom_call.1} parent=5 // pred_fallthru
        _
    $region6: #{tpu_custom_call.1} parent=1 // loop_footer
      %s24 = sadd.s32 1, %s20
    $region7: #{tpu_custom_call.1} parent=1 // loop_footer_branch
      %19 = sbr.rel target = $region3
    $region8: #{tpu_custom_call.1} parent=1 // loop_exit
      _
    %928 = vsyncpa [#allocation3], 1
    %s929 = scalar_lea.sflag [#allocation3], 1
    %930 = vsyncpa %s929, 1
    %931 = vsyncpa [#allocation4], 1
    %s932 = scalar_lea.sflag [#allocation4], 1
    %933 = vsyncpa %s932, 1

</llo_original>
